<compile_context>
chip_gen: v5e
topology: v5e:2x2
jax: 0.10.0
libtpu: 0.0.40
codegen_flags: <defaults>
</compile_context>

<pallas_src>
import functools

import jax
import jax.numpy as jnp
from jax.experimental import pallas as pl
from jax.experimental.pallas import tpu as pltpu


def _cdiv(a, b):
    return -(-a // b)


def _round_down(x, m):
    return (x // m) * m


def _round_up(x, m):
    return _cdiv(x, m) * m


def _device_kind():
    try:
        return (jax.devices()[0].device_kind or "").lower()
    except Exception:
        return ""


def _vmem_capacity_bytes():
    """Per-TensorCore VMEM capacity with a generation-aware fallback."""
    kind = _device_kind()
    cap = None
    try:
        info = pltpu.get_tpu_info()
        c = getattr(info, "vmem_capacity_bytes", None)
        if c:
            cap = int(c)
    except Exception:
        cap = None
    if not cap:
        cap = (64 if "v7" in kind else 128) * 1024 * 1024
    if "v7" in kind:
        cap = min(cap, 64 * 1024 * 1024)   # v7x VMEM is 64 MiB per TensorCore
    return max(cap, 48 * 1024 * 1024)


def _num_tensorcores():
    """TensorCores addressable by one pallas_call (2 on v7x/megacore, else 1)."""
    try:
        info = pltpu.get_tpu_info()
        for name in ("num_cores", "core_count", "num_tensorcores",
                     "tensorcore_count", "num_tensor_cores"):
            v = getattr(info, name, None)
            if v:
                return max(1, min(2, int(v)))
    except Exception:
        pass
    if "v7" in _device_kind():
        return 2
    return 1


def _choose_fold(b, n):
    """Pick f | n for the zero-copy view (b, n) -> (b*f, n//f).

    Prefers r = b*f a multiple of 8 (full sublane occupancy), nf = n//f a
    multiple of 128 (no masked tail), and longer rows (bigger DMA strips).
    """
    best_f, best_score = 1, -1.0
    f_limit = min(n, max(1, 1024 // max(b, 1)))
    for f in range(1, f_limit + 1):
        if n % f:
            continue
        r = b * f
        nf = n // f
        sublane_fill = r / float(_cdiv(r, 8) * 8)
        if nf % 128 == 0:
            lane_score = 1.0
        elif nf >= 128:
            lane_score = 0.5
        else:
            lane_score = nf / 256.0
        size_score = 1.0 if nf >= 512 else nf / 512.0
        score = 3.0 * sublane_fill + lane_score + 0.5 * size_score
        if score > best_score + 1e-9:
            best_score, best_f = score, f
    return best_f


def _soft_dice_kernel(x_ref, t_ref, inter_ref, denom_ref, acc_i_ref, acc_d_ref,
                      *, n_inner, n_tiles, tn, nf, has_tail, has_dups):
    pi = pl.program_id(0)     # parallel chunk (one per TensorCore on 2-TC parts)
    j = pl.program_id(1)      # lane-tile step within the chunk
    tile_id = pi * n_inner + j

    @pl.when(j == 0)
    def _():
        acc_i_ref[...] = jnp.zeros_like(acc_i_ref)
        acc_d_ref[...] = jnp.zeros_like(acc_d_ref)

    def _accumulate(masked):
        x = x_ref[...].astype(jnp.float32)
        t = t_ref[...].astype(jnp.float32)
        # sigmoid(x) == 0.5 * (tanh(0.5 x) + 1): a single EUP push per element.
        preds = 0.5 * (jnp.tanh(0.5 * x) + 1.0)
        if masked:
            # Only the final lane tile is partial, so `rem` is a compile-time
            # constant. Mask BOTH streams so the unspecified padding past nf
            # contributes exactly zero (NaN-safe).
            rem = nf - (n_tiles - 1) * tn
            lane = jax.lax.broadcasted_iota(jnp.int32, x.shape, 1)
            ok = lane < rem
            preds = jnp.where(ok, preds, 0.0)
            t = jnp.where(ok, t, 0.0)
        # Pure elementwise accumulation into lane-wide f32 scratch: no XLU
        # cross-lane reduce and no sub-128-lane store in the steady state.
        acc_i_ref[...] += preds * t
        acc_d_ref[...] += preds + t

    if has_tail:
        @pl.when(tile_id == n_tiles - 1)
        def _():
            _accumulate(True)

        @pl.when(tile_id < n_tiles - 1)
        def _():
            _accumulate(False)
    else:
        if has_dups:
            # Overhanging duplicate grid step (clamped DMA): skip its compute.
            @pl.when(tile_id < n_tiles)
            def _():
                _accumulate(False)
        else:
            _accumulate(False)

    # One cross-lane reduction + one narrow store per chunk, at the last step.
    @pl.when(j == n_inner - 1)
    def _():
        inter_ref[...] = jnp.sum(acc_i_ref[...], axis=1, keepdims=True)[None]
        denom_ref[...] = jnp.sum(acc_d_ref[...], axis=1, keepdims=True)[None]


def soft_dice_coef(inputs, target, *, class_id=-1, smooth=0.001,
                   _max_block_lanes=None):
    """Pallas TPU implementation of SoftDiceCoef.forward. Returns a f32 scalar.

    The kernel is HBM-bandwidth-bound; feed logits as bf16 and targets as
    bool/int8 if possible (cast happens in-register inside the kernel).
    """
    if class_id > -1:
        inputs = inputs[:, class_id]
        target = target[:, class_id]

    b = inputs.shape[0]
    x = inputs.reshape(b, -1)
    t = target.reshape(b, -1)
    if not jnp.issubdtype(x.dtype, jnp.floating):
        x = x.astype(jnp.float32)
    if t.dtype == jnp.bool_:
        t = t.astype(jnp.int8)
    n = x.shape[1]

    # --- sublane folding: (B, N) -> (B*F, N/F), zero-copy row-major view ----
    f = _choose_fold(b, n)
    r = b * f
    nf = n // f
    xf = x.reshape(r, nf)
    tf = t.reshape(r, nf)

    # --- generation-aware tile selection -------------------------------------
    sx = jnp.dtype(xf.dtype).itemsize
    st = jnp.dtype(tf.dtype).itemsize
    vmem_cap = _vmem_capacity_bytes()
    num_tc = _num_tensorcores()

    # Bytes per lane column: double-buffered inputs + two f32 accumulators.
    per_col = r * (2 * (sx + st) + 8)
    budget = int(0.55 * vmem_cap)
    tn_cap = max(128, _round_down(budget // per_col, 128))
    if _max_block_lanes is not None:          # testing hook: force small tiles
        tn_cap = max(128, min(tn_cap, _round_down(_max_block_lanes, 128)))
    if num_tc >= 2 and nf > 256:
        # Guarantee >= 2 lane tiles so both TensorCores get work.
        tn_cap = min(tn_cap, max(128, _round_up(_cdiv(nf, 2), 128)))

    if nf <= tn_cap:
        tn, n_tiles, has_tail = nf, 1, False   # single full-extent tile
    else:
        tn = tn_cap                            # multiple of 128
        n_tiles = _cdiv(nf, tn)
        has_tail = (nf % tn) != 0

    # --- split the lane reduction across the available TensorCores ----------
    p_chunks = 2 if (num_tc >= 2 and n_tiles >= 2) else 1
    n_inner = _cdiv(n_tiles, p_chunks)
    has_dups = (p_chunks * n_inner) != n_tiles

    vmem_limit = 2 * r * tn * (sx + st) + 2 * r * tn * 4 + (4 << 20)
    vmem_limit = int(min(max(vmem_limit, 32 << 20), vmem_cap - (8 << 20)))

    if has_dups:
        def in_index_map(pi, j):
            return (0, jnp.minimum(pi * n_inner + j, n_tiles - 1))
    else:
        def in_index_map(pi, j):
            return (0, pi * n_inner + j)

    kernel = functools.partial(
        _soft_dice_kernel,
        n_inner=n_inner, n_tiles=n_tiles, tn=tn, nf=nf,
        has_tail=has_tail, has_dups=has_dups,
    )

    acc_shape = jax.ShapeDtypeStruct((p_chunks, r, 1), jnp.float32)
    acc_spec = pl.BlockSpec((1, r, 1), lambda pi, j: (pi, 0, 0))

    inter_p, denom_p = pl.pallas_call(
        kernel,
        out_shape=(acc_shape, acc_shape),
        grid_spec=pltpu.PrefetchScalarGridSpec(
            num_scalar_prefetch=0,
            grid=(p_chunks, n_inner),
            in_specs=[
                pl.BlockSpec((r, tn), in_index_map),
                pl.BlockSpec((r, tn), in_index_map),
            ],
            out_specs=(acc_spec, acc_spec),
            scratch_shapes=[
                pltpu.VMEM((r, tn), jnp.float32),
                pltpu.VMEM((r, tn), jnp.float32),
            ],
        ),
        compiler_params=pltpu.CompilerParams(
            dimension_semantics=("parallel", "arbitrary"),
            vmem_limit_bytes=vmem_limit,
        ),
    )(xf, tf)

    # Tiny epilogue in plain JAX: combine chunk partials, un-fold sublanes.
    inter = inter_p.sum(axis=(0, 2)).reshape(b, f).sum(axis=1)
    denom = denom_p.sum(axis=(0, 2)).reshape(b, f).sum(axis=1)
    dice = jnp.mean((2.0 * inter + smooth) / (denom + smooth))
    return dice


def _reference(inputs, target, *, class_id=-1, smooth=0.001):
    if class_id > -1:
        inputs = inputs[:, class_id]
        target = target[:, class_id]
    preds = jax.nn.sigmoid(inputs.reshape(inputs.shape[0], -1).astype(jnp.float32))
    trues = target.reshape(target.shape[0], -1).astype(jnp.float32)
    inter = jnp.sum(preds * trues, axis=1)
    return jnp.mean(
        (2.0 * inter + smooth) / (preds.sum(axis=1) + trues.sum(axis=1) + smooth)
    )


def _check(shape, key, *, class_id=-1, max_block_lanes=None,
           logits_dtype=jnp.float32, atol=2e-5, rtol=2e-5):
    k1, k2 = jax.random.split(key)
    inputs = jax.random.normal(k1, shape, dtype=jnp.float32).astype(logits_dtype)
    target = (jax.random.uniform(k2, shape) > 0.5).astype(jnp.float32)
    got = soft_dice_coef(inputs, target, class_id=class_id,
                         _max_block_lanes=max_block_lanes)
    got = jax.block_until_ready(got)
    ref = _reference(inputs, target, class_id=class_id)
    assert jnp.allclose(got, ref, atol=atol, rtol=rtol), (shape, got, ref)


if __name__ == "__main__":
    key = jax.random.PRNGKey(0)
    keys = jax.random.split(key, 6)

    # Primary module-consistent shape: single full tile, grid (1, 1) on 1-TC.
    _check((2, 4, 16, 16), keys[0], class_id=-1)
    # class_id slicing path.
    _check((2, 4, 16, 16), keys[1], class_id=1)
    # Masked tail only on the last tile (nf=324 with 128-lane tiles -> 3 tiles).
    _check((2, 4, 18, 18), keys[2], max_block_lanes=128)
    # Even multi-tile reduction, no tail (nf=512 -> 4 tiles of 128).
    _check((2, 4, 16, 32), keys[3], max_block_lanes=128)
    # Odd tile count: duplicate-step skip (on 2-TC parts) + masked tail.
    _check((2, 1, 44, 100), keys[4], max_block_lanes=128)
    # Native-dtype streaming: bf16 logits cast to f32 in-register.
    _check((2, 4, 16, 16), keys[5], logits_dtype=jnp.bfloat16, atol=1e-4, rtol=1e-4)

    print("KERNEL_OK")
</pallas_src>

<mosaic_0001>
module attributes {stable_mosaic.version = 11 : i64} {
  func.func @_soft_dice_kernel(%arg0: i32, %arg1: i32, %arg2: memref<8x256xf32, #tpu.memory_space<vmem>>, %arg3: memref<8x256xf32, #tpu.memory_space<vmem>>, %arg4: memref<1x8x1xf32, #tpu.memory_space<vmem>>, %arg5: memref<1x8x1xf32, #tpu.memory_space<vmem>>, %arg6: memref<8x256xf32, #tpu.memory_space<vmem>>, %arg7: memref<8x256xf32, #tpu.memory_space<vmem>>) attributes {dimension_semantics = [#tpu.dimension_semantics<parallel>, #tpu.dimension_semantics<arbitrary>], iteration_bounds = array<i64: 1, 1>, scalar_prefetch = 0 : i64, scratch_operands = 2 : i64, tpu.core_type = #tpu.core_type<tc>, window_params = [{transform_indices = @transform_0, window_bounds = array<i64: 8, 256>}, {transform_indices = @transform_1, window_bounds = array<i64: 8, 256>}, {transform_indices = @transform_2, window_bounds = array<i64: 1, 8, 1>}, {transform_indices = @transform_3, window_bounds = array<i64: 1, 8, 1>}]} {
    %c0_i32 = arith.constant 0 : i32
    %0 = arith.cmpi eq, %arg1, %c0_i32 : i32
    %1 = arith.extui %0 : i1 to i32
    %c0_i32_0 = arith.constant 0 : i32
    %2 = arith.cmpi ne, %1, %c0_i32_0 : i32
    scf.if %2 {
      %cst_16 = arith.constant 0.000000e+00 : f32
      %23 = vector.broadcast %cst_16 : f32 to vector<8x256xf32>
      %c0_17 = arith.constant 0 : index
      %c0_18 = arith.constant 0 : index
      %24 = vector.load %arg6[%c0_17, %c0_18] : memref<8x256xf32, #tpu.memory_space<vmem>>, vector<8x256xf32>
      tpu.vector_store %arg6[%c0_17, %c0_18], %23 {strides = array<i32>} : memref<8x256xf32, #tpu.memory_space<vmem>>, vector<8x256xf32>,
      %cst_19 = arith.constant 0.000000e+00 : f32
      %25 = vector.broadcast %cst_19 : f32 to vector<8x256xf32>
      %c0_20 = arith.constant 0 : index
      %c0_21 = arith.constant 0 : index
      %26 = vector.load %arg7[%c0_20, %c0_21] : memref<8x256xf32, #tpu.memory_space<vmem>>, vector<8x256xf32>
      tpu.vector_store %arg7[%c0_20, %c0_21], %25 {strides = array<i32>} : memref<8x256xf32, #tpu.memory_space<vmem>>, vector<8x256xf32>,
    } else {
    }
    %c0 = arith.constant 0 : index
    %c0_1 = arith.constant 0 : index
    %3 = vector.load %arg2[%c0, %c0_1] : memref<8x256xf32, #tpu.memory_space<vmem>>, vector<8x256xf32>
    %c0_2 = arith.constant 0 : index
    %c0_3 = arith.constant 0 : index
    %4 = vector.load %arg3[%c0_2, %c0_3] : memref<8x256xf32, #tpu.memory_space<vmem>>, vector<8x256xf32>
    %cst = arith.constant 5.000000e-01 : f32
    %5 = vector.broadcast %cst : f32 to vector<8x256xf32>
    %6 = arith.mulf %5, %3 : vector<8x256xf32>
    %7 = math.tanh %6 : vector<8x256xf32>
    %cst_4 = arith.constant 1.000000e+00 : f32
    %8 = vector.broadcast %cst_4 : f32 to vector<8x256xf32>
    %9 = arith.addf %7, %8 : vector<8x256xf32>
    %cst_5 = arith.constant 5.000000e-01 : f32
    %10 = vector.broadcast %cst_5 : f32 to vector<8x256xf32>
    %11 = arith.mulf %10, %9 : vector<8x256xf32>
    %c0_6 = arith.constant 0 : index
    %c0_7 = arith.constant 0 : index
    %12 = vector.load %arg6[%c0_6, %c0_7] : memref<8x256xf32, #tpu.memory_space<vmem>>, vector<8x256xf32>
    %13 = arith.mulf %11, %4 : vector<8x256xf32>
    %14 = arith.addf %12, %13 : vector<8x256xf32>
    %c0_8 = arith.constant 0 : index
    %c0_9 = arith.constant 0 : index
    %15 = vector.load %arg6[%c0_8, %c0_9] : memref<8x256xf32, #tpu.memory_space<vmem>>, vector<8x256xf32>
    tpu.vector_store %arg6[%c0_8, %c0_9], %14 {strides = array<i32>} : memref<8x256xf32, #tpu.memory_space<vmem>>, vector<8x256xf32>,
    %c0_10 = arith.constant 0 : index
    %c0_11 = arith.constant 0 : index
    %16 = vector.load %arg7[%c0_10, %c0_11] : memref<8x256xf32, #tpu.memory_space<vmem>>, vector<8x256xf32>
    %17 = arith.addf %11, %4 : vector<8x256xf32>
    %18 = arith.addf %16, %17 : vector<8x256xf32>
    %c0_12 = arith.constant 0 : index
    %c0_13 = arith.constant 0 : index
    %19 = vector.load %arg7[%c0_12, %c0_13] : memref<8x256xf32, #tpu.memory_space<vmem>>, vector<8x256xf32>
    tpu.vector_store %arg7[%c0_12, %c0_13], %18 {strides = array<i32>} : memref<8x256xf32, #tpu.memory_space<vmem>>, vector<8x256xf32>,
    %c0_i32_14 = arith.constant 0 : i32
    %20 = arith.cmpi eq, %arg1, %c0_i32_14 : i32
    %21 = arith.extui %20 : i1 to i32
    %c0_i32_15 = arith.constant 0 : i32
    %22 = arith.cmpi ne, %21, %c0_i32_15 : i32
    scf.if %22 {
      %c0_16 = arith.constant 0 : index
      %c0_17 = arith.constant 0 : index
      %23 = vector.load %arg6[%c0_16, %c0_17] : memref<8x256xf32, #tpu.memory_space<vmem>>, vector<8x256xf32>
      %cst_18 = arith.constant dense<0.000000e+00> : vector<8xf32>
      %24 = vector.multi_reduction <add>, %23, %cst_18 [1] : vector<8x256xf32> to vector<8xf32>
      %25 = vector.shape_cast %24 : vector<8xf32> to vector<8x1xf32>
      %26 = vector.shape_cast %25 : vector<8x1xf32> to vector<1x8x1xf32>
      %c0_19 = arith.constant 0 : index
      %c0_20 = arith.constant 0 : index
      %c0_21 = arith.constant 0 : index
      %27 = vector.load %arg4[%c0_19, %c0_20, %c0_21] : memref<1x8x1xf32, #tpu.memory_space<vmem>>, vector<1x8x1xf32>
      tpu.vector_store %arg4[%c0_19, %c0_20, %c0_21], %26 {strides = array<i32>} : memref<1x8x1xf32, #tpu.memory_space<vmem>>, vector<1x8x1xf32>,
      %c0_22 = arith.constant 0 : index
      %c0_23 = arith.constant 0 : index
      %28 = vector.load %arg7[%c0_22, %c0_23] : memref<8x256xf32, #tpu.memory_space<vmem>>, vector<8x256xf32>
      %cst_24 = arith.constant dense<0.000000e+00> : vector<8xf32>
      %29 = vector.multi_reduction <add>, %28, %cst_24 [1] : vector<8x256xf32> to vector<8xf32>
      %30 = vector.shape_cast %29 : vector<8xf32> to vector<8x1xf32>
      %31 = vector.shape_cast %30 : vector<8x1xf32> to vector<1x8x1xf32>
      %c0_25 = arith.constant 0 : index
      %c0_26 = arith.constant 0 : index
      %c0_27 = arith.constant 0 : index
      %32 = vector.load %arg5[%c0_25, %c0_26, %c0_27] : memref<1x8x1xf32, #tpu.memory_space<vmem>>, vector<1x8x1xf32>
      tpu.vector_store %arg5[%c0_25, %c0_26, %c0_27], %31 {strides = array<i32>} : memref<1x8x1xf32, #tpu.memory_space<vmem>>, vector<1x8x1xf32>,
    } else {
    }
    return
  }
  func.func @transform_0(%arg0: i32, %arg1: i32) -> (i32, i32) {
    %c1_i32 = arith.constant 1 : i32
    %0 = arith.muli %arg0, %c1_i32 : i32
    %1 = arith.addi %0, %arg1 : i32
    %c0_i32 = arith.constant 0 : i32
    %c0_i32_0 = arith.constant 0 : i32
    return %c0_i32, %1 : i32, i32
  }
  func.func @transform_1(%arg0: i32, %arg1: i32) -> (i32, i32) {
    %c1_i32 = arith.constant 1 : i32
    %0 = arith.muli %arg0, %c1_i32 : i32
    %1 = arith.addi %0, %arg1 : i32
    %c0_i32 = arith.constant 0 : i32
    %c0_i32_0 = arith.constant 0 : i32
    return %c0_i32, %1 : i32, i32
  }
  func.func @transform_2(%arg0: i32, %arg1: i32) -> (i32, i32, i32) {
    %c0_i32 = arith.constant 0 : i32
    %c0_i32_0 = arith.constant 0 : i32
    %c0_i32_1 = arith.constant 0 : i32
    return %arg0, %c0_i32, %c0_i32_0 : i32, i32, i32
  }
  func.func @transform_3(%arg0: i32, %arg1: i32) -> (i32, i32, i32) {
    %c0_i32 = arith.constant 0 : i32
    %c0_i32_0 = arith.constant 0 : i32
    %c0_i32_1 = arith.constant 0 : i32
    return %arg0, %c0_i32, %c0_i32_0 : i32, i32, i32
  }
}

</mosaic_0001>

<llo_original>
// kernel: tpu_custom_call.1
$region0: #{tpu_custom_call.1}
  #allocation0 [shape = 'u32[]', space=smem, size = 0x4, offset = 0x4, fixed_abs, tag = 'smem constant byte address 0x4 - core index']
  #allocation1 [shape = 'u32[72,128]{1,0:T(1,128)}', space=vmem, size = 0x9000, scoped, tag = 'internal scratch']
  #allocation2 [shape = 'f32[8,256]{1,0:T(8,128)}', space=vmem, size = 0x2000, scoped, tag = 'scratch operand']
  #allocation3 [shape = 'f32[8,256]{1,0:T(8,128)}', space=vmem, size = 0x2000, scoped, tag = 'scratch operand']
  %s0 = inlined_call_operand.hbm [shape: f32[8,256], index: 0, kind: input, shape index: {}]
  %s1 = inlined_call_operand.hbm [shape: f32[8,256], index: 1, kind: input, shape index: {}]
  %s2 = inlined_call_operand.vmem [shape: f32[1,8,1], index: 2, kind: output, shape index: {0}]
  %s3 = inlined_call_operand.vmem [shape: f32[1,8,1], index: 3, kind: output, shape index: {1}]
  %4 = xla_tuple %s2, %s3
  %s5 = sld [smem:[#allocation0]]
  $region42: #{tpu_custom_call.1} parent=0
    _
  %s7 = ssub.s32 1, %s5
  %s8 = scalar_select 0, %s7, %s5
  $region1: #{tpu_custom_call.1} parent=0
    #allocation4 [shape = 'u8[8192]{0}', space=vmem, size = 0x2000, scoped, tag = 'input window, operand 0, single buffered']
    #allocation5 [shape = 's32[1]{0}', space=sflag, size = 0x4, scoped, tag = 'scoped memory for tpu_custom_call.1']
    #allocation6 [shape = 'u8[8192]{0}', space=vmem, size = 0x2000, scoped, tag = 'input window, operand 1, single buffered']
    #allocation7 [shape = 's32[1]{0}', space=sflag, size = 0x4, scoped, tag = 'scoped memory for tpu_custom_call.1']
    %9 = vsyncpa [#allocation5], 0
    %10 = vsyncpa [#allocation7], 0
    // Predicated region
    $region2: #{tpu_custom_call.1} parent=1 // pred_check
      _
    $region3: #{tpu_custom_call.1} parent=1 // pred_check_branch
      %12 = sbr.rel (0) target = $region5
    $region4: #{tpu_custom_call.1} parent=1 // pred_region
      %s13 = sadd.s32 0, 0
      %s14 = smul.u32 2, %s13
      %16 = vsyncadd [#allocation5], 0
      %s17 = smul.addr %s14, 8
      %s18 = scalar_lea.hbm %s0, %s17
      %s20 = sshll.u32 %s18, 4
      %s21 = int_to_ptr.hbm [resolvable:$true] %s20
      %s22 = sshll.u32 [#allocation4], 4
      %s23 = int_to_ptr.vmem [resolvable:$true] %s22
      %25 = dma.hbm_to_vmem [thread:$0]  %s21, 256, %s23, [#allocation5]
    $region5: #{tpu_custom_call.1} parent=1 // pred_fallthru
      _
    // Predicated region
    $region6: #{tpu_custom_call.1} parent=1 // pred_check
      _
    $region7: #{tpu_custom_call.1} parent=1 // pred_check_branch
      %27 = sbr.rel (0) target = $region9
    $region8: #{tpu_custom_call.1} parent=1 // pred_region
      %s28 = sadd.s32 0, 0
      %s29 = smul.u32 2, %s28
      %31 = vsyncadd [#allocation7], 0
      %s32 = smul.addr %s29, 8
      %s33 = scalar_lea.hbm %s1, %s32
      %s35 = sshll.u32 %s33, 4
      %s36 = int_to_ptr.hbm [resolvable:$true] %s35
      %s37 = sshll.u32 [#allocation6], 4
      %s38 = int_to_ptr.vmem [resolvable:$true] %s37
      %40 = dma.hbm_to_vmem [thread:$0]  %s36, 256, %s38, [#allocation7]
    $region9: #{tpu_custom_call.1} parent=1 // pred_fallthru
      _
    // Predicated region
    $region10: #{tpu_custom_call.1} parent=1 // pred_check
      _
    $region11: #{tpu_custom_call.1} parent=1 // pred_check_branch
      %42 = sbr.rel (0) target = $region13
    $region12: #{tpu_custom_call.1} parent=1 // pred_region
      %44 = dma.done [#allocation5], 256
    $region13: #{tpu_custom_call.1} parent=1 // pred_fallthru
      _
    // Predicated region
    $region14: #{tpu_custom_call.1} parent=1 // pred_check
      _
    $region15: #{tpu_custom_call.1} parent=1 // pred_check_branch
      %46 = sbr.rel (0) target = $region17
    $region16: #{tpu_custom_call.1} parent=1 // pred_region
      %48 = dma.done [#allocation7], 256
    $region17: #{tpu_custom_call.1} parent=1 // pred_fallthru
      _
    %s49 = sadd.s32 0, 0
    %s50 = smul.u32 2, %s49
    %s51 = sadd.s32 0, 0
    %s52 = smul.u32 2, %s51
    %p53 = scmp.eq.s32.totalorder 0, 0
    // Predicated region
    $region18: #{tpu_custom_call.1} parent=1 // pred_check
      %p54 = pneg %p53
    $region19: #{tpu_custom_call.1} parent=1 // pred_check_branch
      %56 = sbr.rel (%p54) target = $region21
    $region20: #{tpu_custom_call.1} parent=1 // pred_region
      %57 = vst [vmem:[#allocation2] sm:$0xff] 0.0
      %58 = vst [vmem:[#allocation2 + $0x8] sm:$0xff] 0.0
      %59 = vst [vmem:[#allocation3] sm:$0xff] 0.0
      %60 = vst [vmem:[#allocation3 + $0x8] sm:$0xff] 0.0
    $region21: #{tpu_custom_call.1} parent=1 // pred_fallthru
      _
    %v61 = vld [vmem:[#allocation4] sm:$0xff]
    %v62 = vld [vmem:[#allocation4 + $0x8] sm:$0xff]
    %v63 = vld [vmem:[#allocation6] sm:$0xff]
    %v64 = vld [vmem:[#allocation6 + $0x8] sm:$0xff]
    %v65 = vmul.f32 %v61, 0.5
    %v66 = vmul.f32 %v62, 0.5
    %v67 = vtanh.pop %v65
    %v68 = vtanh.pop %v66
    %v69 = vadd.f32 %v67, 1.0
    %v70 = vadd.f32 %v68, 1.0
    %v71 = vmul.f32 %v69, 0.5
    %v72 = vmul.f32 %v70, 0.5
    %v73 = vld [vmem:[#allocation2] sm:$0xff]
    %v74 = vld [vmem:[#allocation2 + $0x8] sm:$0xff]
    %v75 = vmul.f32 %v71, %v63
    %v76 = vmul.f32 %v72, %v64
    %v77 = vadd.f32 %v73, %v75
    %v78 = vadd.f32 %v74, %v76
    %79 = vst [vmem:[#allocation2] sm:$0xff] %v77
    %80 = vst [vmem:[#allocation2 + $0x8] sm:$0xff] %v78
    %v81 = vld [vmem:[#allocation3] sm:$0xff]
    %v82 = vld [vmem:[#allocation3 + $0x8] sm:$0xff]
    %v83 = vadd.f32 %v71, %v63
    %v84 = vadd.f32 %v72, %v64
    %v85 = vadd.f32 %v81, %v83
    %v86 = vadd.f32 %v82, %v84
    %87 = vst [vmem:[#allocation3] sm:$0xff] %v85
    %88 = vst [vmem:[#allocation3 + $0x8] sm:$0xff] %v86
    // Predicated region
    $region22: #{tpu_custom_call.1} parent=1 // pred_check
      %p89 = pneg %p53
    $region23: #{tpu_custom_call.1} parent=1 // pred_check_branch
      %91 = sbr.rel (%p89) target = $region25
    $region24: #{tpu_custom_call.1} parent=1 // pred_region
      %v92 = vld [vmem:[#allocation2] sm:$0xff]
      %v93 = vld [vmem:[#allocation2 + $0x8] sm:$0xff]
      %v94 = vadd.f32 %v92, %v93
      %95 = vadd.xlane.f32.xlu0 %v94
      %v96 = vpop.xlane.xlu0 %95
      %vm97 = vcmask 7168
      %98 = vst.msk [vmem:[%s2] sm:$0xff] %vm97, %v96
      %v99 = vld [vmem:[#allocation3] sm:$0xff]
      %v100 = vld [vmem:[#allocation3 + $0x8] sm:$0xff]
      %v101 = vadd.f32 %v99, %v100
      %102 = vadd.xlane.f32.xlu0 %v101
      %v103 = vpop.xlane.xlu0 %102
      %104 = vst.msk [vmem:[%s3] sm:$0xff] %vm97, %v103
    $region25: #{tpu_custom_call.1} parent=1 // pred_fallthru
      _
    // Predicated region
    $region26: #{tpu_custom_call.1} parent=1 // pred_check
      _
    $region27: #{tpu_custom_call.1} parent=1 // pred_check_branch
      %106 = sbr.rel (0) target = $region29
    $region28: #{tpu_custom_call.1} parent=1 // pred_region
      _
    $region29: #{tpu_custom_call.1} parent=1 // pred_fallthru
      _
    // Predicated region
    $region30: #{tpu_custom_call.1} parent=1 // pred_check
      _
    $region31: #{tpu_custom_call.1} parent=1 // pred_check_branch
      %108 = sbr.rel (0) target = $region33
    $region32: #{tpu_custom_call.1} parent=1 // pred_region
      _
    $region33: #{tpu_custom_call.1} parent=1 // pred_fallthru
      _
    // Predicated region
    $region34: #{tpu_custom_call.1} parent=1 // pred_check
      _
    $region35: #{tpu_custom_call.1} parent=1 // pred_check_branch
      %110 = sbr.rel (0) target = $region37
    $region36: #{tpu_custom_call.1} parent=1 // pred_region
      _
    $region37: #{tpu_custom_call.1} parent=1 // pred_fallthru
      _
    // Predicated region
    $region38: #{tpu_custom_call.1} parent=1 // pred_check
      _
    $region39: #{tpu_custom_call.1} parent=1 // pred_check_branch
      %112 = sbr.rel (0) target = $region41
    $region40: #{tpu_custom_call.1} parent=1 // pred_region
      _
    $region41: #{tpu_custom_call.1} parent=1 // pred_fallthru
      _
    %113 = vsyncpa [#allocation5], 1
    %114 = vsyncpa [#allocation7], 1

</llo_original>
